<compile_context>
chip_gen: v6e
topology: v6e:2x2x1
jax: 0.10.0
libtpu: 0.0.40
codegen_flags: <defaults>
</compile_context>

<pallas_src>
import math

import jax
import jax.numpy as jnp
from jax.experimental import pallas as pl
from jax.experimental.pallas import tpu as pltpu

INPUT_DIM = 5
HIDDEN_DIMS = [64, 32, 16]
BN_EPS = 1e-5

# ---- packed parameter layout ------------------------------------------------------------------
# bf16 weight slab (MXU LHS operands only), rows aligned to the bf16 (16,128) packing:
_R_W1 = 0      # rows [  0: 64) cols [0: 5)  = W1 (BN-folded)
_R_W2 = 64     # rows [ 64: 96) cols [0:64)  = W2 (BN-folded)
_R_W3 = 96     # rows [ 96:112) cols [0:32)  = W3 (BN-folded)
WSLAB_ROWS, WSLAB_COLS = 128, 128           # (128,128) bf16 = 32 KiB, one resident DMA

# f32 aux slab: per-layer biases + output-layer vectors kept in f32 (VPU path, v5e-friendly):
#   col 0: b1 (64)   col 1: b2 (32)   col 2: b3 (16)
#   col 3: Wo^T column (16)   col 4: (Wo@Wsk)^T column (5)   col 5 row 0: bo + Wo@bsk
AUX_ROWS, AUX_COLS = 64, 128

MAX_TILE_B = 8192        # batch-tile cap; ~6 MiB of per-tile intermediates at 8192 lanes


def _mlp_kernel(xt_ref, wslab_ref, aux_ref, out_ref):
    """Whole forward pass for one batch tile, batch dimension mapped to lanes.

    xt_ref:    (5, T)   f32  input features, batch in lanes (T multiple of 128)
    wslab_ref: (128,128) bf16 BN-folded Linear weights (resident, constant index_map)
    aux_ref:   (64,128) f32  biases + output-layer columns (resident)
    out_ref:   (1, T)   f32  lane-dense logits row
    """
    xt = xt_ref[...]                                   # (5, T) f32
    xt_b = xt.astype(jnp.bfloat16)                     # bf16 only at the MXU input

    # Layer 1: Linear(5->64) + folded BN, ReLU (dropout = identity in eval mode)
    h = jnp.dot(wslab_ref[_R_W1:_R_W1 + 64, 0:5], xt_b,
                preferred_element_type=jnp.float32)    # (64, T) f32 accum
    h = jnp.maximum(h + aux_ref[0:64, 0:1], 0.0)

    # Layer 2: Linear(64->32) + folded BN, ReLU
    h = jnp.dot(wslab_ref[_R_W2:_R_W2 + 32, 0:64], h.astype(jnp.bfloat16),
                preferred_element_type=jnp.float32)    # (32, T)
    h = jnp.maximum(h + aux_ref[0:32, 1:2], 0.0)

    # Layer 3: Linear(32->16) + folded BN, ReLU
    h = jnp.dot(wslab_ref[_R_W3:_R_W3 + 16, 0:32], h.astype(jnp.bfloat16),
                preferred_element_type=jnp.float32)    # (16, T)
    h = jnp.maximum(h + aux_ref[0:16, 2:3], 0.0)

    # Output layer with the skip connection folded through it, computed on the VPU/XLU
    # (no M=1 MXU dots):  out = sum_f h*Wo[f] + sum_f x*(Wo@Wsk)[f] + (bo + Wo@bsk)
    out_ref[...] = (
        jnp.sum(h * aux_ref[0:16, 3:4], axis=0, keepdims=True)
        + jnp.sum(xt * aux_ref[0:5, 4:5], axis=0, keepdims=True)
        + aux_ref[0:1, 5:6]
    )


def _round_up(n, m):
    return ((n + m - 1) // m) * m


def nicu_forward(x, wslab, aux):
    """ModelWithExplainability.forward (eval) via Pallas: x (B,5) f32 -> (B,1) f32 logits."""
    B = x.shape[0]
    if B <= 128:
        tile = 128
    else:
        # Guarantee >= 2 grid steps so the ("parallel",) batch axis lands on both TCs on v7x.
        tile = min(MAX_TILE_B, _round_up((B + 1) // 2, 128))
    num_tiles = pl.cdiv(B, tile)
    b_pad = num_tiles * tile

    # Batch-in-lanes layout; pad only the tail tile (padded lanes produce garbage logits that are
    # sliced away below — keep that invariant).
    xt = x.T                                           # (5, B)
    if b_pad != B:
        xt = jnp.pad(xt, ((0, 0), (0, b_pad - B)))     # (5, b_pad)

    out_row = pl.pallas_call(
        _mlp_kernel,
        out_shape=jax.ShapeDtypeStruct((1, b_pad), jnp.float32),
        grid=(num_tiles,),
        in_specs=[
            pl.BlockSpec((INPUT_DIM, tile), lambda i: (0, i)),        # batch-tiled activations
            pl.BlockSpec((WSLAB_ROWS, WSLAB_COLS), lambda i: (0, 0)),  # resident bf16 weights
            pl.BlockSpec((AUX_ROWS, AUX_COLS), lambda i: (0, 0)),      # resident f32 biases/vecs
        ],
        out_specs=pl.BlockSpec((1, tile), lambda i: (0, i)),          # lane-dense logits row
        compiler_params=pltpu.CompilerParams(
            dimension_semantics=("parallel",),    # shard batch tiles across TCs on v7x
            vmem_limit_bytes=32 * 1024 * 1024,
        ),
    )(xt, wslab, aux)

    return out_row[0, :B].reshape(B, 1)


# ---- parameter construction (PyTorch-equivalent init) + host-side folding/packing --------------
def _xavier_normal(key, out_dim, in_dim):
    # torch.nn.init.xavier_normal_: std = sqrt(2 / (fan_in + fan_out)); torch weight is (out, in).
    std = math.sqrt(2.0 / (in_dim + out_dim))
    return jax.random.normal(key, (out_dim, in_dim), dtype=jnp.float32) * std


def init_raw_params(key):
    """Torch-convention parameters: Linear weights (out,in), zero biases, fresh BN stats."""
    keys = jax.random.split(key, 5)
    dims = [INPUT_DIM] + HIDDEN_DIMS
    layers = []
    for i, (din, dout) in enumerate(zip(dims[:-1], dims[1:])):
        W = _xavier_normal(keys[i], dout, din)
        b = jnp.zeros((dout,), jnp.float32)
        gamma = jnp.ones((dout,), jnp.float32)   # BN weight
        beta = jnp.zeros((dout,), jnp.float32)   # BN bias
        mean = jnp.zeros((dout,), jnp.float32)   # running_mean
        var = jnp.ones((dout,), jnp.float32)     # running_var
        layers.append((W, b, gamma, beta, mean, var))
    Wsk = _xavier_normal(keys[3], HIDDEN_DIMS[-1], INPUT_DIM)
    bsk = jnp.zeros((HIDDEN_DIMS[-1],), jnp.float32)
    Wo = _xavier_normal(keys[4], 1, HIDDEN_DIMS[-1])
    bo = jnp.zeros((1,), jnp.float32)
    return {"layers": layers, "Wsk": Wsk, "bsk": bsk, "Wo": Wo, "bo": bo}


def fold_and_pack(raw):
    """Fold eval-mode BatchNorm into the Linears, fold the skip through the output layer, and pack:
      * a (128,128) bf16 weight slab (MXU operands only),
      * a (64,128) f32 aux slab with biases + output-layer columns (VPU operands).
    Works for arbitrary trained BN stats: scale = gamma/sqrt(var+eps), shift = beta - mean*scale.
    """
    wslab = jnp.zeros((WSLAB_ROWS, WSLAB_COLS), jnp.float32)
    aux = jnp.zeros((AUX_ROWS, AUX_COLS), jnp.float32)
    rows = [_R_W1, _R_W2, _R_W3]
    for i, (W, b, gamma, beta, mean, var) in enumerate(raw["layers"]):
        scale = gamma / jnp.sqrt(var + BN_EPS)
        shift = beta - mean * scale
        Wf = W * scale[:, None]                  # (out, in) -- already the transposed layout
        bf = b * scale + shift                   # (out,)
        out_dim, in_dim = W.shape
        wslab = wslab.at[rows[i]:rows[i] + out_dim, :in_dim].set(Wf)
        aux = aux.at[:out_dim, i].set(bf)

    Wo, bo = raw["Wo"], raw["bo"]                # (1,16), (1,)
    Wsk, bsk = raw["Wsk"], raw["bsk"]            # (16,5), (16,)
    wsko = Wo @ Wsk                              # (1,5): skip folded through output weight
    bfin = bo + Wo @ bsk                         # (1,)
    aux = aux.at[:16, 3].set(Wo[0])              # Wo^T column (f32, VPU path)
    aux = aux.at[:5, 4].set(wsko[0])             # (Wo@Wsk)^T column
    aux = aux.at[0, 5].set(bfin[0])              # fused output bias
    return wslab.astype(jnp.bfloat16), aux


def reference_forward(x, raw):
    """Plain-JAX ground truth: unfolded eval-mode forward of the PyTorch module (f32)."""
    hp = jax.lax.Precision.HIGHEST
    h = x
    for (W, b, gamma, beta, mean, var) in raw["layers"]:
        h = jnp.dot(h, W.T, precision=hp) + b
        h = (h - mean) * (gamma / jnp.sqrt(var + BN_EPS)) + beta
        h = jnp.maximum(h, 0.0)                  # ReLU; dropout is identity in eval mode
    h = h + jnp.dot(x, raw["Wsk"].T, precision=hp) + raw["bsk"]
    return jnp.dot(h, raw["Wo"].T, precision=hp) + raw["bo"]


if __name__ == "__main__":
    key = jax.random.PRNGKey(0)
    pkey, xkey = jax.random.split(key)

    raw = init_raw_params(pkey)
    wslab, aux = fold_and_pack(raw)

    # Small deterministic batch of "vitals": (batch=8, features=5).
    x = jax.random.normal(xkey, (8, INPUT_DIM), dtype=jnp.float32)

    out = jax.block_until_ready(nicu_forward(x, wslab, aux))
    ref = reference_forward(x, raw)

    assert out.shape == (8, 1)
    # Tolerance covers the explicit bf16 matmul operands (f32 accumulation) vs the f32
    # HIGHEST-precision reference; a structural bug would produce errors orders larger.
    assert jnp.allclose(out, ref, atol=1e-2, rtol=1e-2), "Pallas output mismatch vs reference"

    print("KERNEL_OK")
</pallas_src>

<mosaic_0001>
module attributes {stable_mosaic.version = 11 : i64} {
  func.func @_mlp_kernel(%arg0: i32, %arg1: memref<5x128xf32, #tpu.memory_space<vmem>>, %arg2: memref<128x128xbf16, #tpu.memory_space<vmem>>, %arg3: memref<64x128xf32, #tpu.memory_space<vmem>>, %arg4: memref<1x128xf32, #tpu.memory_space<vmem>>) attributes {dimension_semantics = [#tpu.dimension_semantics<parallel>], iteration_bounds = array<i64: 1>, scalar_prefetch = 0 : i64, scratch_operands = 0 : i64, tpu.core_type = #tpu.core_type<tc>, window_params = [{transform_indices = @transform_0, window_bounds = array<i64: 5, 128>}, {pipeline_mode = #tpu.pipeline_mode<synchronous>, transform_indices = @transform_1, window_bounds = array<i64: 128, 128>}, {pipeline_mode = #tpu.pipeline_mode<synchronous>, transform_indices = @transform_2, window_bounds = array<i64: 64, 128>}, {transform_indices = @transform_3, window_bounds = array<i64: 1, 128>}]} {
    %c0 = arith.constant 0 : index
    %c0_0 = arith.constant 0 : index
    %0 = vector.load %arg1[%c0, %c0_0] : memref<5x128xf32, #tpu.memory_space<vmem>>, vector<5x128xf32>
    %1 = arith.truncf %0 : vector<5x128xf32> to vector<5x128xbf16>
    %c0_1 = arith.constant 0 : index
    %c0_2 = arith.constant 0 : index
    %2 = vector.load %arg2[%c0_1, %c0_2] : memref<128x128xbf16, #tpu.memory_space<vmem>>, vector<64x5xbf16>
    %cst = arith.constant dense<0.000000e+00> : vector<64x128xf32>
    %3 = tpu.matmul %2, %1, %cst {dimension_numbers = #tpu.dot_dimension_numbers<[1], [0], [0], [1], [0, 0, 1, 1], [], []>} : vector<64x5xbf16>, vector<5x128xbf16>, vector<64x128xf32> -> vector<64x128xf32>
    %c0_3 = arith.constant 0 : index
    %c0_4 = arith.constant 0 : index
    %4 = vector.load %arg3[%c0_3, %c0_4] : memref<64x128xf32, #tpu.memory_space<vmem>>, vector<64x1xf32>
    %5 = vector.broadcast %4 : vector<64x1xf32> to vector<64x128xf32>
    %6 = arith.addf %3, %5 : vector<64x128xf32>
    %cst_5 = arith.constant 0.000000e+00 : f32
    %7 = vector.broadcast %cst_5 : f32 to vector<64x128xf32>
    %8 = arith.maximumf %6, %7 : vector<64x128xf32>
    %c64 = arith.constant 64 : index
    %c0_6 = arith.constant 0 : index
    %9 = vector.load %arg2[%c64, %c0_6] : memref<128x128xbf16, #tpu.memory_space<vmem>>, vector<32x64xbf16>
    %10 = arith.truncf %8 : vector<64x128xf32> to vector<64x128xbf16>
    %cst_7 = arith.constant dense<0.000000e+00> : vector<32x128xf32>
    %11 = tpu.matmul %9, %10, %cst_7 {dimension_numbers = #tpu.dot_dimension_numbers<[1], [0], [0], [1], [0, 0, 1, 1], [], []>} : vector<32x64xbf16>, vector<64x128xbf16>, vector<32x128xf32> -> vector<32x128xf32>
    %c0_8 = arith.constant 0 : index
    %c1 = arith.constant 1 : index
    %12 = vector.load %arg3[%c0_8, %c1] : memref<64x128xf32, #tpu.memory_space<vmem>>, vector<32x1xf32>
    %13 = vector.broadcast %12 : vector<32x1xf32> to vector<32x128xf32>
    %14 = arith.addf %11, %13 : vector<32x128xf32>
    %cst_9 = arith.constant 0.000000e+00 : f32
    %15 = vector.broadcast %cst_9 : f32 to vector<32x128xf32>
    %16 = arith.maximumf %14, %15 : vector<32x128xf32>
    %c96 = arith.constant 96 : index
    %c0_10 = arith.constant 0 : index
    %17 = vector.load %arg2[%c96, %c0_10] : memref<128x128xbf16, #tpu.memory_space<vmem>>, vector<16x32xbf16>
    %18 = arith.truncf %16 : vector<32x128xf32> to vector<32x128xbf16>
    %cst_11 = arith.constant dense<0.000000e+00> : vector<16x128xf32>
    %19 = tpu.matmul %17, %18, %cst_11 {dimension_numbers = #tpu.dot_dimension_numbers<[1], [0], [0], [1], [0, 0, 1, 1], [], []>} : vector<16x32xbf16>, vector<32x128xbf16>, vector<16x128xf32> -> vector<16x128xf32>
    %c0_12 = arith.constant 0 : index
    %c2 = arith.constant 2 : index
    %20 = vector.load %arg3[%c0_12, %c2] : memref<64x128xf32, #tpu.memory_space<vmem>>, vector<16x1xf32>
    %21 = vector.broadcast %20 : vector<16x1xf32> to vector<16x128xf32>
    %22 = arith.addf %19, %21 : vector<16x128xf32>
    %cst_13 = arith.constant 0.000000e+00 : f32
    %23 = vector.broadcast %cst_13 : f32 to vector<16x128xf32>
    %24 = arith.maximumf %22, %23 : vector<16x128xf32>
    %c0_14 = arith.constant 0 : index
    %c3 = arith.constant 3 : index
    %25 = vector.load %arg3[%c0_14, %c3] : memref<64x128xf32, #tpu.memory_space<vmem>>, vector<16x1xf32>
    %26 = vector.broadcast %25 : vector<16x1xf32> to vector<16x128xf32>
    %27 = arith.mulf %24, %26 : vector<16x128xf32>
    %cst_15 = arith.constant dense<0.000000e+00> : vector<128xf32>
    %28 = vector.multi_reduction <add>, %27, %cst_15 [0] : vector<16x128xf32> to vector<128xf32>
    %29 = vector.shape_cast %28 : vector<128xf32> to vector<1x128xf32>
    %c0_16 = arith.constant 0 : index
    %c4 = arith.constant 4 : index
    %30 = vector.load %arg3[%c0_16, %c4] : memref<64x128xf32, #tpu.memory_space<vmem>>, vector<5x1xf32>
    %31 = vector.broadcast %30 : vector<5x1xf32> to vector<5x128xf32>
    %32 = arith.mulf %0, %31 : vector<5x128xf32>
    %cst_17 = arith.constant dense<0.000000e+00> : vector<128xf32>
    %33 = vector.multi_reduction <add>, %32, %cst_17 [0] : vector<5x128xf32> to vector<128xf32>
    %34 = vector.shape_cast %33 : vector<128xf32> to vector<1x128xf32>
    %35 = arith.addf %29, %34 : vector<1x128xf32>
    %c0_18 = arith.constant 0 : index
    %c5 = arith.constant 5 : index
    %36 = vector.load %arg3[%c0_18, %c5] : memref<64x128xf32, #tpu.memory_space<vmem>>, vector<1x1xf32>
    %37 = vector.broadcast %36 : vector<1x1xf32> to vector<1x128xf32>
    %38 = arith.addf %35, %37 : vector<1x128xf32>
    %c0_19 = arith.constant 0 : index
    %c0_20 = arith.constant 0 : index
    %39 = vector.load %arg4[%c0_19, %c0_20] : memref<1x128xf32, #tpu.memory_space<vmem>>, vector<1x128xf32>
    tpu.vector_store %arg4[%c0_19, %c0_20], %38 {strides = array<i32>} : memref<1x128xf32, #tpu.memory_space<vmem>>, vector<1x128xf32>,
    return
  }
  func.func @transform_0(%arg0: i32) -> (i32, i32) {
    %c0_i32 = arith.constant 0 : i32
    %c0_i32_0 = arith.constant 0 : i32
    return %c0_i32, %arg0 : i32, i32
  }
  func.func @transform_1(%arg0: i32) -> (i32, i32) {
    %c0_i32 = arith.constant 0 : i32
    %c0_i32_0 = arith.constant 0 : i32
    %c0_i32_1 = arith.constant 0 : i32
    return %c0_i32, %c0_i32_0 : i32, i32
  }
  func.func @transform_2(%arg0: i32) -> (i32, i32) {
    %c0_i32 = arith.constant 0 : i32
    %c0_i32_0 = arith.constant 0 : i32
    %c0_i32_1 = arith.constant 0 : i32
    return %c0_i32, %c0_i32_0 : i32, i32
  }
  func.func @transform_3(%arg0: i32) -> (i32, i32) {
    %c0_i32 = arith.constant 0 : i32
    %c0_i32_0 = arith.constant 0 : i32
    return %c0_i32, %arg0 : i32, i32
  }
}

</mosaic_0001>

<llo_original>
// kernel: tpu_custom_call.1
$region0: #{tpu_custom_call.1}
  #allocation0 [shape = 'u32[]', space=smem, size = 0x4, offset = 0x4, fixed_abs, tag = 'smem constant byte address 0x4 - core index']
  #allocation1 [shape = 'u32[144,128]{1,0:T(1,128)}', space=vmem, size = 0x12000, scoped, tag = 'internal scratch']
  %s0 = inlined_call_operand.hbm [shape: f32[5,128], index: 0, kind: input, shape index: {}]
  %s1 = inlined_call_operand.hbm [shape: bf16[128,128], index: 1, kind: input, shape index: {}]
  %s2 = inlined_call_operand.hbm [shape: f32[64,128], index: 2, kind: input, shape index: {}]
  %s3 = inlined_call_operand.hbm [shape: f32[1,128], index: 3, kind: output, shape index: {}]
  %s4 = sld [smem:[#allocation0]]
  $region34: #{tpu_custom_call.1} parent=0
    _
  %s6 = ssub.s32 1, %s4
  %s7 = scalar_select 0, %s6, %s4
  $region1: #{tpu_custom_call.1} parent=0
    #allocation2 [shape = 'u8[4096]{0}', space=vmem, size = 0x1000, scoped, tag = 'input window, operand 0, single buffered']
    #allocation3 [shape = 's32[1]{0}', space=sflag, size = 0x4, scoped, tag = 'scoped memory for tpu_custom_call.1']
    #allocation4 [shape = 's32[1]{0}', space=sflag, size = 0x4, scoped, tag = 'scoped memory for tpu_custom_call.1']
    #allocation5 [shape = 'u8[32768]{0}', space=vmem, size = 0x8000, scoped, tag = 'input window, operand 1, single buffered']
    #allocation6 [shape = 's32[1]{0}', space=sflag, size = 0x4, scoped, tag = 'scoped memory for tpu_custom_call.1']
    #allocation7 [shape = 'u8[32768]{0}', space=vmem, size = 0x8000, scoped, tag = 'input window, operand 2, single buffered']
    #allocation8 [shape = 'u8[512]{0}', space=vmem, size = 0x400, scoped, tag = 'output window, operand 0, single buffered']
    %8 = vsyncpa [#allocation3], 0
    %9 = vsyncpa [#allocation6], 0
    %10 = vsyncpa [#allocation4], 0
    // Predicated region
    $region2: #{tpu_custom_call.1} parent=1 // pred_check
      _
    $region3: #{tpu_custom_call.1} parent=1 // pred_check_branch
      %12 = sbr.rel (0) target = $region5
    $region4: #{tpu_custom_call.1} parent=1 // pred_region
      %s14 = ssub.s32 128, 128
      %15 = vsyncadd [#allocation3], %s14
      %s17 = sshll.u32 [#allocation2], 4
      %s18 = int_to_ptr.vmem [resolvable:$true] %s17
      %20 = dma.hbm_to_vmem [thread:$0]  %s0, 128, %s18, [#allocation3]
    $region5: #{tpu_custom_call.1} parent=1 // pred_fallthru
      _
    // Predicated region
    $region6: #{tpu_custom_call.1} parent=1 // pred_check
      _
    $region7: #{tpu_custom_call.1} parent=1 // pred_check_branch
      %22 = sbr.rel (0) target = $region9
    $region8: #{tpu_custom_call.1} parent=1 // pred_region
      %s24 = ssub.s32 1024, 1024
      %25 = vsyncadd [#allocation6], %s24
      %s26 = sshll.u32 [#allocation5], 4
      %s27 = int_to_ptr.vmem [resolvable:$true] %s26
      %32 = dma.hbm_to_vmem [thread:$0]  %s1, 1024, %s27, [#allocation6], 64, 64, 4
    $region9: #{tpu_custom_call.1} parent=1 // pred_fallthru
      _
    // Predicated region
    $region10: #{tpu_custom_call.1} parent=1 // pred_check
      _
    $region11: #{tpu_custom_call.1} parent=1 // pred_check_branch
      %34 = sbr.rel (0) target = $region13
    $region12: #{tpu_custom_call.1} parent=1 // pred_region
      %s36 = ssub.s32 1024, 1024
      %37 = vsyncadd [#allocation6], %s36
      %s38 = sshll.u32 [#allocation7], 4
      %s39 = int_to_ptr.vmem [resolvable:$true] %s38
      %44 = dma.hbm_to_vmem [thread:$0]  %s2, 1024, %s39, [#allocation6], 128, 128, 8
    $region13: #{tpu_custom_call.1} parent=1 // pred_fallthru
      _
    // Predicated region
    $region14: #{tpu_custom_call.1} parent=1 // pred_check
      _
    $region15: #{tpu_custom_call.1} parent=1 // pred_check_branch
      %46 = sbr.rel (0) target = $region17
    $region16: #{tpu_custom_call.1} parent=1 // pred_region
      %47 = dma.done [#allocation3], 128
    $region17: #{tpu_custom_call.1} parent=1 // pred_fallthru
      _
    // Predicated region
    $region18: #{tpu_custom_call.1} parent=1 // pred_check
      _
    $region19: #{tpu_custom_call.1} parent=1 // pred_check_branch
      %49 = sbr.rel (0) target = $region21
    $region20: #{tpu_custom_call.1} parent=1 // pred_region
      %50 = dma.done [#allocation6], 1024
    $region21: #{tpu_custom_call.1} parent=1 // pred_fallthru
      _
    // Predicated region
    $region22: #{tpu_custom_call.1} parent=1 // pred_check
      _
    $region23: #{tpu_custom_call.1} parent=1 // pred_check_branch
      %52 = sbr.rel (0) target = $region25
    $region24: #{tpu_custom_call.1} parent=1 // pred_region
      %53 = dma.done [#allocation6], 1024
    $region25: #{tpu_custom_call.1} parent=1 // pred_fallthru
      _
    %v55 = vld [vmem:[#allocation2] sm:$0x1f]
    %v56 = vpack.c.bf16 %v55, %v55
    %v57 = vld [vmem:[#allocation5] sm:$0xf]
    %v58 = vld [vmem:[#allocation5 + $0x4] sm:$0xf]
    %v59 = vld [vmem:[#allocation5 + $0x8] sm:$0xf]
    %v60 = vld [vmem:[#allocation5 + $0xc] sm:$0xf]
    %v61 = vld [vmem:[#allocation5 + $0x10] sm:$0xf]
    %v62 = vld [vmem:[#allocation5 + $0x14] sm:$0xf]
    %v63 = vld [vmem:[#allocation5 + $0x18] sm:$0xf]
    %v64 = vld [vmem:[#allocation5 + $0x1c] sm:$0xf]
    %v65 = vld [vmem:[#allocation7] sm:$0xff]
    %v66 = vld [vmem:[#allocation7 + $0x8] sm:$0xff]
    %v67 = vld [vmem:[#allocation7 + $0x10] sm:$0xff]
    %v68 = vld [vmem:[#allocation7 + $0x18] sm:$0xff]
    %v69 = vld [vmem:[#allocation7 + $0x20] sm:$0xff]
    %v70 = vld [vmem:[#allocation7 + $0x28] sm:$0xff]
    %v71 = vld [vmem:[#allocation7 + $0x30] sm:$0xff]
    %v72 = vld [vmem:[#allocation7 + $0x38] sm:$0xff]
    %74 = vset.pattern.permute.xlu0 0
    %75 = vperm.xlu0 %74, %v65
    %v76 = vpop.permute.xlu0 %75
    %79 = vset.pattern.permute.xlu0 0
    %80 = vperm.xlu0 %79, %v66
    %v81 = vpop.permute.xlu0 %80
    %84 = vset.pattern.permute.xlu0 0
    %85 = vperm.xlu0 %84, %v67
    %v86 = vpop.permute.xlu0 %85
    %89 = vset.pattern.permute.xlu0 0
    %90 = vperm.xlu0 %89, %v68
    %v91 = vpop.permute.xlu0 %90
    %94 = vset.pattern.permute.xlu0 0
    %95 = vperm.xlu0 %94, %v69
    %v96 = vpop.permute.xlu0 %95
    %99 = vset.pattern.permute.xlu0 0
    %100 = vperm.xlu0 %99, %v70
    %v101 = vpop.permute.xlu0 %100
    %104 = vset.pattern.permute.xlu0 0
    %105 = vperm.xlu0 %104, %v71
    %v106 = vpop.permute.xlu0 %105
    %109 = vset.pattern.permute.xlu0 0
    %110 = vperm.xlu0 %109, %v72
    %v111 = vpop.permute.xlu0 %110
    %v121 = vunpack.c.l.b16 %v57
    %v122 = vunpack.c.l.b16 %v58
    %v123 = vunpack.c.l.b16 %v59
    %v124 = vunpack.c.l.b16 %v60
    %v125 = vunpack.c.l.b16 %v61
    %v126 = vunpack.c.l.b16 %v62
    %v127 = vunpack.c.l.b16 %v63
    %v128 = vunpack.c.l.b16 %v64
    %v129 = vpack.c.b16 %v122, %v121
    %v130 = vpack.c.b16 %v124, %v123
    %v131 = vpack.c.b16 %v126, %v125
    %v132 = vpack.c.b16 %v128, %v127
    %vm133 = vcmask 39936
    %v135 = vsel %vm133, %v129, 0
    %v138 = vsel %vm133, %v130, 0
    %v141 = vsel %vm133, %v131, 0
    %v144 = vsel %vm133, %v132, 0
    %vm146 = vcmask 1041408
    %vm147 = vcmask 1042432
    %v148 = vsel %vm146, 4294967295, 65535
    %v149 = vsel %vm147, %v148, 0
    %v151 = vand.u32 %v56, %v149
    %153 = vmatprep.subr.bf16.mxu0 0
    %154 = vmatpush1.bf16.msra.mxu0 0
    %155 = vmatprep.subr.bf16.mxu0 0
    %156 = vmatpush1.bf16.msra.mxu0 0
    %157 = vmatprep.subr.bf16.mxu0 0
    %158 = vmatpush1.bf16.msra.mxu0 0
    %159 = vmatprep.subr.bf16.mxu0 0
    %160 = vmatpush1.bf16.msra.mxu0 0
    %161 = vmatprep.subr.bf16.mxu0 0
    %162 = vmatpush1.bf16.msra.mxu0 0
    %163 = vmatprep.subr.bf16.mxu0 0
    %164 = vmatpush1.bf16.msra.mxu0 0
    %165 = vmatprep.subr.bf16.mxu0 0
    %166 = vmatpush1.bf16.msra.mxu0 0
    %167 = vmatprep.subr.bf16.mxu0 0
    %168 = vmatpush1.bf16.msra.mxu0 %v151
    %169 = vmatprep.subr.bf16.mxu0 0
    %170 = vmatpush2.bf16.msra.mxu0 0
    %171 = vmatprep.subr.bf16.mxu0 0
    %172 = vmatpush2.bf16.msra.mxu0 0
    %173 = vmatprep.subr.bf16.mxu0 0
    %174 = vmatpush2.bf16.msra.mxu0 0
    %175 = vmatprep.subr.bf16.mxu0 0
    %176 = vmatpush2.bf16.msra.mxu0 0
    %177 = vmatprep.subr.bf16.mxu0 0
    %178 = vmatpush2.bf16.msra.mxu0 0
    %179 = vmatprep.subr.bf16.mxu0 0
    %180 = vmatpush2.bf16.msra.mxu0 0
    %181 = vmatprep.subr.bf16.mxu0 0
    %182 = vmatpush2.bf16.msra.mxu0 0
    %183 = vmatprep.subr.bf16.mxu0 0
    %184 = vmatpush2.bf16.msra.mxu0 0
    %185 = vmatprep.mubr.bf16.mxu0 0
    %186 = vmatmul.mubr.bf16.gmra.mxu0 %v135
    %v187 = vpop.f32.mrf.mxu0
    %v188 = vadd.f32 %v76, %v187
    %v189 = vpop.f32.mrf.mxu0
    %v190 = vpop.f32.mrf.mxu0
    %v191 = vadd.f32 %v81, %v190
    %v192 = vpop.f32.mrf.mxu0
    %193 = vmatprep.mubr.bf16.mxu0 0
    %194 = vmatmul.mubr.bf16.gmra.mxu0 %v138
    %v195 = vpop.f32.mrf.mxu0
    %v196 = vadd.f32 %v86, %v195
    %v197 = vpop.f32.mrf.mxu0
    %v198 = vpop.f32.mrf.mxu0
    %v199 = vadd.f32 %v91, %v198
    %v200 = vpop.f32.mrf.mxu0
    %201 = vmatprep.mubr.bf16.mxu0 0
    %202 = vmatmul.mubr.bf16.gmra.mxu0 %v141
    %v203 = vpop.f32.mrf.mxu0
    %v204 = vadd.f32 %v96, %v203
    %v205 = vpop.f32.mrf.mxu0
    %v206 = vpop.f32.mrf.mxu0
    %v207 = vadd.f32 %v101, %v206
    %v208 = vpop.f32.mrf.mxu0
    %209 = vmatprep.mubr.bf16.mxu0 0
    %210 = vmatmul.mubr.bf16.gmra.mxu0 %v144
    %v211 = vpop.f32.mrf.mxu0
    %v212 = vadd.f32 %v106, %v211
    %v213 = vpop.f32.mrf.mxu0
    %v214 = vpop.f32.mrf.mxu0
    %v215 = vadd.f32 %v111, %v214
    %v216 = vpop.f32.mrf.mxu0
    %217 = vdwg.mxu0
    %v218 = vmax.f32 %v188, 0.0
    %v219 = vmax.f32 %v191, 0.0
    %v220 = vmax.f32 %v196, 0.0
    %v221 = vmax.f32 %v199, 0.0
    %v222 = vmax.f32 %v204, 0.0
    %v223 = vmax.f32 %v207, 0.0
    %v224 = vmax.f32 %v212, 0.0
    %v225 = vmax.f32 %v215, 0.0
    %v226 = vld [vmem:[#allocation5 + $0x20] sm:$0xf]
    %v227 = vld [vmem:[#allocation5 + $0x24] sm:$0xf]
    %v228 = vld [vmem:[#allocation5 + $0x28] sm:$0xf]
    %v229 = vld [vmem:[#allocation5 + $0x2c] sm:$0xf]
    %v230 = vpack.c.bf16 %v219, %v218
    %v231 = vpack.c.bf16 %v221, %v220
    %v232 = vpack.c.bf16 %v223, %v222
    %v233 = vpack.c.bf16 %v225, %v224
    %v234 = vld [vmem:[#allocation7] sm:$0xff]
    %v235 = vld [vmem:[#allocation7 + $0x8] sm:$0xff]
    %v236 = vld [vmem:[#allocation7 + $0x10] sm:$0xff]
    %v237 = vld [vmem:[#allocation7 + $0x18] sm:$0xff]
    %239 = vset.pattern.permute.xlu0 1
    %240 = vperm.xlu0 %239, %v234
    %v241 = vpop.permute.xlu0 %240
    %244 = vset.pattern.permute.xlu0 1
    %245 = vperm.xlu0 %244, %v235
    %v246 = vpop.permute.xlu0 %245
    %249 = vset.pattern.permute.xlu0 1
    %250 = vperm.xlu0 %249, %v236
    %v251 = vpop.permute.xlu0 %250
    %254 = vset.pattern.permute.xlu0 1
    %255 = vperm.xlu0 %254, %v237
    %v256 = vpop.permute.xlu0 %255
    %v262 = vunpack.c.l.b16 %v226
    %v263 = vunpack.c.l.b16 %v227
    %v264 = vunpack.c.l.b16 %v228
    %v265 = vunpack.c.l.b16 %v229
    %v266 = vpack.c.b16 %v263, %v262
    %v267 = vpack.c.b16 %v265, %v264
    %vm268 = vcmask 523264
    %v270 = vsel %vm268, %v266, 0
    %v273 = vsel %vm268, %v267, 0
    %275 = vmatprep.subr.bf16.mxu0 0
    %276 = vmatpush1.bf16.msra.mxu0 0
    %277 = vmatprep.subr.bf16.mxu0 0
    %278 = vmatpush1.bf16.msra.mxu0 0
    %279 = vmatprep.subr.bf16.mxu0 0
    %280 = vmatpush1.bf16.msra.mxu0 0
    %281 = vmatprep.subr.bf16.mxu0 0
    %282 = vmatpush1.bf16.msra.mxu0 0
    %283 = vmatprep.subr.bf16.mxu0 0
    %284 = vmatpush1.bf16.msra.mxu0 %v233
    %285 = vmatprep.subr.bf16.mxu0 0
    %286 = vmatpush1.bf16.msra.mxu0 %v232
    %287 = vmatprep.subr.bf16.mxu0 0
    %288 = vmatpush1.bf16.msra.mxu0 %v231
    %289 = vmatprep.subr.bf16.mxu0 0
    %290 = vmatpush1.bf16.msra.mxu0 %v230
    %291 = vmatprep.subr.bf16.mxu0 0
    %292 = vmatpush2.bf16.msra.mxu0 0
    %293 = vmatprep.subr.bf16.mxu0 0
    %294 = vmatpush2.bf16.msra.mxu0 0
    %295 = vmatprep.subr.bf16.mxu0 0
    %296 = vmatpush2.bf16.msra.mxu0 0
    %297 = vmatprep.subr.bf16.mxu0 0
    %298 = vmatpush2.bf16.msra.mxu0 0
    %299 = vmatprep.subr.bf16.mxu0 0
    %300 = vmatpush2.bf16.msra.mxu0 0
    %301 = vmatprep.subr.bf16.mxu0 0
    %302 = vmatpush2.bf16.msra.mxu0 0
    %303 = vmatprep.subr.bf16.mxu0 0
    %304 = vmatpush2.bf16.msra.mxu0 0
    %305 = vmatprep.subr.bf16.mxu0 0
    %306 = vmatpush2.bf16.msra.mxu0 0
    %307 = vmatprep.mubr.bf16.mxu0 0
    %308 = vmatmul.mubr.bf16.gmra.mxu0 %v270
    %v309 = vpop.f32.mrf.mxu0
    %v310 = vadd.f32 %v241, %v309
    %v311 = vpop.f32.mrf.mxu0
    %v312 = vpop.f32.mrf.mxu0
    %v313 = vadd.f32 %v246, %v312
    %v314 = vpop.f32.mrf.mxu0
    %315 = vmatprep.mubr.bf16.mxu0 0
    %316 = vmatmul.mubr.bf16.gmra.mxu0 %v273
    %v317 = vpop.f32.mrf.mxu0
    %v318 = vadd.f32 %v251, %v317
    %v319 = vpop.f32.mrf.mxu0
    %v320 = vpop.f32.mrf.mxu0
    %v321 = vadd.f32 %v256, %v320
    %v322 = vpop.f32.mrf.mxu0
    %323 = vdwg.mxu0
    %v324 = vmax.f32 %v310, 0.0
    %v325 = vmax.f32 %v313, 0.0
    %v326 = vmax.f32 %v318, 0.0
    %v327 = vmax.f32 %v321, 0.0
    %v328 = vld [vmem:[#allocation5 + $0x30] sm:$0xf]
    %v329 = vld [vmem:[#allocation5 + $0x34] sm:$0xf]
    %v330 = vpack.c.bf16 %v325, %v324
    %v331 = vpack.c.bf16 %v327, %v326
    %v332 = vld [vmem:[#allocation7] sm:$0xff]
    %v333 = vld [vmem:[#allocation7 + $0x8] sm:$0xff]
    %335 = vset.pattern.permute.xlu0 2
    %336 = vperm.xlu0 %335, %v332
    %v337 = vpop.permute.xlu0 %336
    %340 = vset.pattern.permute.xlu0 2
    %341 = vperm.xlu0 %340, %v333
    %v342 = vpop.permute.xlu0 %341
    %v346 = vunpack.c.l.b16 %v328
    %v347 = vunpack.c.l.b16 %v329
    %v348 = vpack.c.b16 %v347, %v346
    %vm349 = vcmask 261120
    %v351 = vsel %vm349, %v348, 0
    %353 = vmatprep.subr.bf16.mxu0 0
    %354 = vmatpush1.bf16.msra.mxu0 0
    %355 = vmatprep.subr.bf16.mxu0 0
    %356 = vmatpush1.bf16.msra.mxu0 0
    %357 = vmatprep.subr.bf16.mxu0 0
    %358 = vmatpush1.bf16.msra.mxu0 0
    %359 = vmatprep.subr.bf16.mxu0 0
    %360 = vmatpush1.bf16.msra.mxu0 0
    %361 = vmatprep.subr.bf16.mxu0 0
    %362 = vmatpush1.bf16.msra.mxu0 0
    %363 = vmatprep.subr.bf16.mxu0 0
    %364 = vmatpush1.bf16.msra.mxu0 0
    %365 = vmatprep.subr.bf16.mxu0 0
    %366 = vmatpush1.bf16.msra.mxu0 %v331
    %367 = vmatprep.subr.bf16.mxu0 0
    %368 = vmatpush1.bf16.msra.mxu0 %v330
    %369 = vmatprep.subr.bf16.mxu0 0
    %370 = vmatpush2.bf16.msra.mxu0 0
    %371 = vmatprep.subr.bf16.mxu0 0
    %372 = vmatpush2.bf16.msra.mxu0 0
    %373 = vmatprep.subr.bf16.mxu0 0
    %374 = vmatpush2.bf16.msra.mxu0 0
    %375 = vmatprep.subr.bf16.mxu0 0
    %376 = vmatpush2.bf16.msra.mxu0 0
    %377 = vmatprep.subr.bf16.mxu0 0
    %378 = vmatpush2.bf16.msra.mxu0 0
    %379 = vmatprep.subr.bf16.mxu0 0
    %380 = vmatpush2.bf16.msra.mxu0 0
    %381 = vmatprep.subr.bf16.mxu0 0
    %382 = vmatpush2.bf16.msra.mxu0 0
    %383 = vmatprep.subr.bf16.mxu0 0
    %384 = vmatpush2.bf16.msra.mxu0 0
    %385 = vmatprep.mubr.bf16.mxu0 0
    %386 = vmatmul.mubr.bf16.gmra.mxu0 %v351
    %v387 = vpop.f32.mrf.mxu0
    %v388 = vadd.f32 %v337, %v387
    %v389 = vpop.f32.mrf.mxu0
    %v390 = vpop.f32.mrf.mxu0
    %v391 = vadd.f32 %v342, %v390
    %v392 = vpop.f32.mrf.mxu0
    %393 = vdwg.mxu0
    %v394 = vmax.f32 %v388, 0.0
    %v395 = vmax.f32 %v391, 0.0
    %396 = vset.pattern.permute.xlu0 3
    %397 = vperm.xlu0 %396, %v332
    %v398 = vpop.permute.xlu0 %397
    %400 = vset.pattern.permute.xlu0 3
    %401 = vperm.xlu0 %400, %v333
    %v402 = vpop.permute.xlu0 %401
    %v404 = vmul.f32 %v394, %v398
    %v405 = vmul.f32 %v395, %v402
    %v406 = vadd.f32 %v404, %v405
    %v407 = vrot.slane %v406, 4
    %v408 = vadd.f32 %v406, %v407
    %v409 = vrot.slane %v408, 2
    %v410 = vadd.f32 %v408, %v409
    %v411 = vrot.slane %v410, 1
    %v412 = vadd.f32 %v410, %v411
    %v413 = vld [vmem:[#allocation7] sm:$0x1f]
    %415 = vset.pattern.permute.xlu0 4
    %416 = vperm.xlu0 %415, %v413
    %v417 = vpop.permute.xlu0 %416
    %v419 = vmul.f32 %v55, %v417
    %vm420 = vcmask 1044480
    %v421 = vsel %vm420, %v419, 0.0
    %v422 = vrot.slane %v421, 4
    %v423 = vadd.f32 %v421, %v422
    %v424 = vrot.slane %v423, 2
    %v425 = vadd.f32 %v423, %v424
    %v426 = vrot.slane %v425, 1
    %v427 = vadd.f32 %v425, %v426
    %v428 = vadd.f32 %v412, %v427
    %v429 = vld [vmem:[#allocation7] sm:$0x1]
    %431 = vset.pattern.permute.xlu0 5
    %432 = vperm.xlu0 %431, %v429
    %v433 = vpop.permute.xlu0 %432
    %v435 = vadd.f32 %v428, %v433
    %436 = vst [vmem:[#allocation8] sm:$0x1] %v435
    // Predicated region
    $region26: #{tpu_custom_call.1} parent=1 // pred_check
      _
    $region27: #{tpu_custom_call.1} parent=1 // pred_check_branch
      %438 = sbr.rel (0) target = $region29
    $region28: #{tpu_custom_call.1} parent=1 // pred_region
      %s440 = ssub.s32 16, 16
      %441 = vsyncadd [#allocation4], %s440
      %s443 = sshll.u32 [#allocation8], 4
      %s444 = int_to_ptr.vmem [resolvable:$true] %s443
      %446 = dma.vmem_to_hbm [thread:$0]  %s444, 16, %s3, [#allocation4]
    $region29: #{tpu_custom_call.1} parent=1 // pred_fallthru
      _
    // Predicated region
    $region30: #{tpu_custom_call.1} parent=1 // pred_check
      _
    $region31: #{tpu_custom_call.1} parent=1 // pred_check_branch
      %448 = sbr.rel (0) target = $region33
    $region32: #{tpu_custom_call.1} parent=1 // pred_region
      %449 = dma.done [#allocation4], 16
    $region33: #{tpu_custom_call.1} parent=1 // pred_fallthru
      _
    %450 = vsyncpa [#allocation3], 1
    %451 = vsyncpa [#allocation6], 1
    %452 = vsyncpa [#allocation4], 1

</llo_original>
